<compile_context>
chip_gen: v7x
topology: tpu7x:2x2x1
jax: 0.10.0
libtpu: 0.0.40
codegen_flags: <defaults>
</compile_context>

<pallas_src>
import jax
import jax.numpy as jnp
from jax.experimental import pallas as pl
from jax.experimental.pallas import tpu as pltpu

_HIDDEN = 50
_IN = 2
_OUT = 2
_DEFAULT_TILE_B = 4096  # multiple of 128; sweepable


def _round_up(x, m):
    return ((x + m - 1) // m) * m


def _mlp_kernel(x_ref, w1_ref, w2_ref, b2_ref, w3_ref, b3_ref,
                w4_ref, b4_ref, out_ref):
    # Batch-on-lanes layout: activations are (features, TILE_B), lane-dense.
    x = x_ref[...]                                                   # (3, TILE_B); last row = ones

    # Layer 1: bias folded into the matmul via the augmented ones row.
    h1 = jnp.dot(w1_ref[...], x, preferred_element_type=jnp.float32)          # (50, TILE_B)
    h1 = jnp.maximum(h1, 0.0)

    h2 = jnp.dot(w2_ref[...], h1, preferred_element_type=jnp.float32) + b2_ref[...]
    h2 = jnp.maximum(h2, 0.0)

    h3 = jnp.dot(w3_ref[...], h2, preferred_element_type=jnp.float32) + b3_ref[...]
    h3 = jnp.maximum(h3, 0.0)

    out = jnp.dot(w4_ref[...], h3, preferred_element_type=jnp.float32) + b4_ref[...]
    out_ref[...] = out.astype(out_ref.dtype)                                  # (2, TILE_B)


def behavioral_cloning_forward(x, params, *, tile_b=_DEFAULT_TILE_B):
    """x: (B, 2) float32; params: dict of (in,out) weights and (out,) biases."""
    B = x.shape[0]

    # Pick a lane-aligned tile and pad the batch so every tile is full.
    b_pad = _round_up(max(B, 1), 128)
    tile_b = min(tile_b, b_pad)           # tile_b stays a multiple of 128
    b_pad = _round_up(b_pad, tile_b)
    n_tiles = b_pad // tile_b

    # Batch-on-lanes layout + ones row for the folded layer-1 bias.
    xt = jnp.pad(x.T, ((0, 0), (0, b_pad - B)))                      # (2, b_pad)
    x_aug = jnp.concatenate([xt, jnp.ones((1, b_pad), jnp.float32)], axis=0)  # (3, b_pad)

    # Weights as (out, in); layer-1 bias folded; other biases as (out, 1).
    w1_aug = jnp.concatenate(
        [params["w1"].T, params["b1"].reshape(-1, 1)], axis=1)       # (50, 3)
    w2_t = params["w2"].T                                            # (50, 50)
    w3_t = params["w3"].T                                            # (50, 50)
    w4_t = params["w4"].T                                            # (2, 50)
    b2c = params["b2"].reshape(-1, 1)                                # (50, 1)
    b3c = params["b3"].reshape(-1, 1)                                # (50, 1)
    b4c = params["b4"].reshape(-1, 1)                                # (2, 1)

    out_t = pl.pallas_call(
        _mlp_kernel,
        out_shape=jax.ShapeDtypeStruct((_OUT, b_pad), jnp.float32),
        grid_spec=pltpu.PrefetchScalarGridSpec(
            num_scalar_prefetch=0,
            grid=(n_tiles,),
            in_specs=[
                pl.BlockSpec((_IN + 1, tile_b), lambda i: (0, i)),          # x_aug (tiled)
                pl.BlockSpec((_HIDDEN, _IN + 1), lambda i: (0, 0)),         # w1_aug (resident)
                pl.BlockSpec((_HIDDEN, _HIDDEN), lambda i: (0, 0)),         # w2
                pl.BlockSpec((_HIDDEN, 1), lambda i: (0, 0)),               # b2
                pl.BlockSpec((_HIDDEN, _HIDDEN), lambda i: (0, 0)),         # w3
                pl.BlockSpec((_HIDDEN, 1), lambda i: (0, 0)),               # b3
                pl.BlockSpec((_OUT, _HIDDEN), lambda i: (0, 0)),            # w4
                pl.BlockSpec((_OUT, 1), lambda i: (0, 0)),                  # b4
            ],
            out_specs=pl.BlockSpec((_OUT, tile_b), lambda i: (0, i)),
        ),
        compiler_params=pltpu.CompilerParams(
            dimension_semantics=("parallel",)),
    )(x_aug, w1_aug, w2_t, b2c, w3_t, b3c, w4_t, b4c)

    # Back to the PyTorch (B, 2) layout; drop the batch padding.
    return out_t[:, :B].T


def init_params(key):
    """Deterministic init mirroring torch.nn.Linear shapes (stored as (in, out))."""
    sizes = [(_IN, _HIDDEN), (_HIDDEN, _HIDDEN), (_HIDDEN, _HIDDEN), (_HIDDEN, _OUT)]
    params = {}
    for i, (fan_in, fan_out) in enumerate(sizes, start=1):
        key, kw, kb = jax.random.split(key, 3)
        bound = 1.0 / jnp.sqrt(fan_in)  # same bound as torch.nn.Linear default
        params[f"w{i}"] = jax.random.uniform(
            kw, (fan_in, fan_out), jnp.float32, minval=-bound, maxval=bound)
        params[f"b{i}"] = jax.random.uniform(
            kb, (fan_out,), jnp.float32, minval=-bound, maxval=bound)
    return params


def reference_forward(x, params):
    h = jnp.maximum(x @ params["w1"] + params["b1"], 0.0)
    h = jnp.maximum(h @ params["w2"] + params["b2"], 0.0)
    h = jnp.maximum(h @ params["w3"] + params["b3"], 0.0)
    return h @ params["w4"] + params["b4"]


if __name__ == "__main__":
    key = jax.random.PRNGKey(0)
    key, kx = jax.random.split(key)

    B = 8
    x = jax.random.normal(kx, (B, _IN), dtype=jnp.float32)
    params = init_params(key)

    out = behavioral_cloning_forward(x, params)
    out = jax.block_until_ready(out)

    ref = reference_forward(x, params)
    assert out.shape == (B, _OUT)
    assert jnp.allclose(out, ref, atol=1e-5, rtol=1e-5), "mismatch vs JAX reference"

    # Also exercise a ragged, multi-tile batch to validate the grid/padding path.
    key, kx2 = jax.random.split(key)
    B2 = 300
    x2 = jax.random.normal(kx2, (B2, _IN), dtype=jnp.float32)
    out2 = jax.block_until_ready(
        behavioral_cloning_forward(x2, params, tile_b=128))
    ref2 = reference_forward(x2, params)
    assert out2.shape == (B2, _OUT)
    assert jnp.allclose(out2, ref2, atol=1e-5, rtol=1e-5), "mismatch (tiled path)"

    print("KERNEL_OK")
</pallas_src>

<mosaic_0001>
module attributes {stable_mosaic.version = 11 : i64} {
  func.func @_mlp_kernel(%arg0: i32, %arg1: memref<3x128xf32, #tpu.memory_space<vmem>>, %arg2: memref<50x3xf32, #tpu.memory_space<vmem>>, %arg3: memref<50x50xf32, #tpu.memory_space<vmem>>, %arg4: memref<50x1xf32, #tpu.memory_space<vmem>>, %arg5: memref<50x50xf32, #tpu.memory_space<vmem>>, %arg6: memref<50x1xf32, #tpu.memory_space<vmem>>, %arg7: memref<2x50xf32, #tpu.memory_space<vmem>>, %arg8: memref<2x1xf32, #tpu.memory_space<vmem>>, %arg9: memref<2x128xf32, #tpu.memory_space<vmem>>) attributes {dimension_semantics = [#tpu.dimension_semantics<parallel>], iteration_bounds = array<i64: 1>, scalar_prefetch = 0 : i64, scratch_operands = 0 : i64, tpu.core_type = #tpu.core_type<tc>, window_params = [{transform_indices = @transform_0, window_bounds = array<i64: 3, 128>}, {pipeline_mode = #tpu.pipeline_mode<synchronous>, transform_indices = @transform_1, window_bounds = array<i64: 50, 3>}, {pipeline_mode = #tpu.pipeline_mode<synchronous>, transform_indices = @transform_2, window_bounds = array<i64: 50, 50>}, {pipeline_mode = #tpu.pipeline_mode<synchronous>, transform_indices = @transform_3, window_bounds = array<i64: 50, 1>}, {pipeline_mode = #tpu.pipeline_mode<synchronous>, transform_indices = @transform_4, window_bounds = array<i64: 50, 50>}, {pipeline_mode = #tpu.pipeline_mode<synchronous>, transform_indices = @transform_5, window_bounds = array<i64: 50, 1>}, {pipeline_mode = #tpu.pipeline_mode<synchronous>, transform_indices = @transform_6, window_bounds = array<i64: 2, 50>}, {pipeline_mode = #tpu.pipeline_mode<synchronous>, transform_indices = @transform_7, window_bounds = array<i64: 2, 1>}, {transform_indices = @transform_8, window_bounds = array<i64: 2, 128>}]} {
    %c0 = arith.constant 0 : index
    %c0_0 = arith.constant 0 : index
    %0 = vector.load %arg1[%c0, %c0_0] : memref<3x128xf32, #tpu.memory_space<vmem>>, vector<3x128xf32>
    %c0_1 = arith.constant 0 : index
    %c0_2 = arith.constant 0 : index
    %1 = vector.load %arg2[%c0_1, %c0_2] : memref<50x3xf32, #tpu.memory_space<vmem>>, vector<50x3xf32>
    %cst = arith.constant dense<0.000000e+00> : vector<50x128xf32>
    %2 = tpu.matmul %1, %0, %cst {dimension_numbers = #tpu.dot_dimension_numbers<[1], [0], [0], [1], [0, 0, 1, 1], [], []>} : vector<50x3xf32>, vector<3x128xf32>, vector<50x128xf32> -> vector<50x128xf32>
    %cst_3 = arith.constant 0.000000e+00 : f32
    %3 = vector.broadcast %cst_3 : f32 to vector<50x128xf32>
    %4 = arith.maximumf %2, %3 : vector<50x128xf32>
    %c0_4 = arith.constant 0 : index
    %c0_5 = arith.constant 0 : index
    %5 = vector.load %arg3[%c0_4, %c0_5] : memref<50x50xf32, #tpu.memory_space<vmem>>, vector<50x50xf32>
    %cst_6 = arith.constant dense<0.000000e+00> : vector<50x128xf32>
    %6 = tpu.matmul %5, %4, %cst_6 {dimension_numbers = #tpu.dot_dimension_numbers<[1], [0], [0], [1], [0, 0, 1, 1], [], []>} : vector<50x50xf32>, vector<50x128xf32>, vector<50x128xf32> -> vector<50x128xf32>
    %c0_7 = arith.constant 0 : index
    %c0_8 = arith.constant 0 : index
    %7 = vector.load %arg4[%c0_7, %c0_8] : memref<50x1xf32, #tpu.memory_space<vmem>>, vector<50x1xf32>
    %8 = vector.broadcast %7 : vector<50x1xf32> to vector<50x128xf32>
    %9 = arith.addf %6, %8 : vector<50x128xf32>
    %cst_9 = arith.constant 0.000000e+00 : f32
    %10 = vector.broadcast %cst_9 : f32 to vector<50x128xf32>
    %11 = arith.maximumf %9, %10 : vector<50x128xf32>
    %c0_10 = arith.constant 0 : index
    %c0_11 = arith.constant 0 : index
    %12 = vector.load %arg5[%c0_10, %c0_11] : memref<50x50xf32, #tpu.memory_space<vmem>>, vector<50x50xf32>
    %cst_12 = arith.constant dense<0.000000e+00> : vector<50x128xf32>
    %13 = tpu.matmul %12, %11, %cst_12 {dimension_numbers = #tpu.dot_dimension_numbers<[1], [0], [0], [1], [0, 0, 1, 1], [], []>} : vector<50x50xf32>, vector<50x128xf32>, vector<50x128xf32> -> vector<50x128xf32>
    %c0_13 = arith.constant 0 : index
    %c0_14 = arith.constant 0 : index
    %14 = vector.load %arg6[%c0_13, %c0_14] : memref<50x1xf32, #tpu.memory_space<vmem>>, vector<50x1xf32>
    %15 = vector.broadcast %14 : vector<50x1xf32> to vector<50x128xf32>
    %16 = arith.addf %13, %15 : vector<50x128xf32>
    %cst_15 = arith.constant 0.000000e+00 : f32
    %17 = vector.broadcast %cst_15 : f32 to vector<50x128xf32>
    %18 = arith.maximumf %16, %17 : vector<50x128xf32>
    %c0_16 = arith.constant 0 : index
    %c0_17 = arith.constant 0 : index
    %19 = vector.load %arg7[%c0_16, %c0_17] : memref<2x50xf32, #tpu.memory_space<vmem>>, vector<2x50xf32>
    %cst_18 = arith.constant dense<0.000000e+00> : vector<2x128xf32>
    %20 = tpu.matmul %19, %18, %cst_18 {dimension_numbers = #tpu.dot_dimension_numbers<[1], [0], [0], [1], [0, 0, 1, 1], [], []>} : vector<2x50xf32>, vector<50x128xf32>, vector<2x128xf32> -> vector<2x128xf32>
    %c0_19 = arith.constant 0 : index
    %c0_20 = arith.constant 0 : index
    %21 = vector.load %arg8[%c0_19, %c0_20] : memref<2x1xf32, #tpu.memory_space<vmem>>, vector<2x1xf32>
    %22 = vector.broadcast %21 : vector<2x1xf32> to vector<2x128xf32>
    %23 = arith.addf %20, %22 : vector<2x128xf32>
    %c0_21 = arith.constant 0 : index
    %c0_22 = arith.constant 0 : index
    %24 = vector.load %arg9[%c0_21, %c0_22] : memref<2x128xf32, #tpu.memory_space<vmem>>, vector<2x128xf32>
    tpu.vector_store %arg9[%c0_21, %c0_22], %23 {strides = array<i32>} : memref<2x128xf32, #tpu.memory_space<vmem>>, vector<2x128xf32>,
    return
  }
  func.func @transform_0(%arg0: i32) -> (i32, i32) {
    %c0_i32 = arith.constant 0 : i32
    %c0_i32_0 = arith.constant 0 : i32
    return %c0_i32, %arg0 : i32, i32
  }
  func.func @transform_1(%arg0: i32) -> (i32, i32) {
    %c0_i32 = arith.constant 0 : i32
    %c0_i32_0 = arith.constant 0 : i32
    %c0_i32_1 = arith.constant 0 : i32
    return %c0_i32, %c0_i32_0 : i32, i32
  }
  func.func @transform_2(%arg0: i32) -> (i32, i32) {
    %c0_i32 = arith.constant 0 : i32
    %c0_i32_0 = arith.constant 0 : i32
    %c0_i32_1 = arith.constant 0 : i32
    return %c0_i32, %c0_i32_0 : i32, i32
  }
  func.func @transform_3(%arg0: i32) -> (i32, i32) {
    %c0_i32 = arith.constant 0 : i32
    %c0_i32_0 = arith.constant 0 : i32
    %c0_i32_1 = arith.constant 0 : i32
    return %c0_i32, %c0_i32_0 : i32, i32
  }
  func.func @transform_4(%arg0: i32) -> (i32, i32) {
    %c0_i32 = arith.constant 0 : i32
    %c0_i32_0 = arith.constant 0 : i32
    %c0_i32_1 = arith.constant 0 : i32
    return %c0_i32, %c0_i32_0 : i32, i32
  }
  func.func @transform_5(%arg0: i32) -> (i32, i32) {
    %c0_i32 = arith.constant 0 : i32
    %c0_i32_0 = arith.constant 0 : i32
    %c0_i32_1 = arith.constant 0 : i32
    return %c0_i32, %c0_i32_0 : i32, i32
  }
  func.func @transform_6(%arg0: i32) -> (i32, i32) {
    %c0_i32 = arith.constant 0 : i32
    %c0_i32_0 = arith.constant 0 : i32
    %c0_i32_1 = arith.constant 0 : i32
    return %c0_i32, %c0_i32_0 : i32, i32
  }
  func.func @transform_7(%arg0: i32) -> (i32, i32) {
    %c0_i32 = arith.constant 0 : i32
    %c0_i32_0 = arith.constant 0 : i32
    %c0_i32_1 = arith.constant 0 : i32
    return %c0_i32, %c0_i32_0 : i32, i32
  }
  func.func @transform_8(%arg0: i32) -> (i32, i32) {
    %c0_i32 = arith.constant 0 : i32
    %c0_i32_0 = arith.constant 0 : i32
    return %c0_i32, %arg0 : i32, i32
  }
}

</mosaic_0001>

<llo_original>
// kernel: tpu_custom_call.1
$region0: #{tpu_custom_call.1}
  #allocation0 [shape = 'u32[]', space=smem, size = 0x4, offset = 0x4, fixed_abs, tag = 'smem constant byte address 0x4 - core index']
  #allocation1 [shape = 'u32[144,128]{1,0:T(1,128)}', space=vmem, size = 0x12000, scoped, tag = 'internal scratch']
  %s0 = inlined_call_operand.vmem [shape: f32[3,128], index: 0, kind: input, shape index: {}]
  %s1 = inlined_call_operand.vmem [shape: f32[50,3], index: 1, kind: input, shape index: {}]
  %s2 = inlined_call_operand.vmem [shape: f32[50,50], index: 2, kind: input, shape index: {}]
  %s3 = inlined_call_operand.vmem [shape: f32[50,1], index: 3, kind: input, shape index: {}]
  %s4 = inlined_call_operand.vmem [shape: f32[50,50], index: 4, kind: input, shape index: {}]
  %s5 = inlined_call_operand.vmem [shape: f32[50,1], index: 5, kind: input, shape index: {}]
  %s6 = inlined_call_operand.vmem [shape: f32[2,50], index: 6, kind: input, shape index: {}]
  %s7 = inlined_call_operand.vmem [shape: f32[2,1], index: 7, kind: input, shape index: {}]
  %s8 = inlined_call_operand.hbm [shape: f32[2,128], index: 8, kind: output, shape index: {}]
  %s9 = sld [smem:[#allocation0]]
  $region42: #{tpu_custom_call.1} parent=0
    _
  %s11 = ssub.s32 1, %s9
  %s12 = scalar_select 0, %s11, %s9
  $region1: #{tpu_custom_call.1} parent=0
    #allocation2 [shape = 'u8[1024]{0}', space=vmem, size = 0x400, scoped, tag = 'output window, operand 0, single buffered']
    #allocation3 [shape = 's32[1]{0}', space=sflag, size = 0x4, scoped, tag = 'scoped memory for tpu_custom_call.1']
    %13 = vsyncpa [#allocation3], 0
    // Predicated region
    $region2: #{tpu_custom_call.1} parent=1 // pred_check
      _
    $region3: #{tpu_custom_call.1} parent=1 // pred_check_branch
      %15 = sbr.rel (0) target = $region5
    $region4: #{tpu_custom_call.1} parent=1 // pred_region
      _
    $region5: #{tpu_custom_call.1} parent=1 // pred_fallthru
      _
    // Predicated region
    $region6: #{tpu_custom_call.1} parent=1 // pred_check
      _
    $region7: #{tpu_custom_call.1} parent=1 // pred_check_branch
      %17 = sbr.rel (0) target = $region9
    $region8: #{tpu_custom_call.1} parent=1 // pred_region
      _
    $region9: #{tpu_custom_call.1} parent=1 // pred_fallthru
      _
    // Predicated region
    $region10: #{tpu_custom_call.1} parent=1 // pred_check
      _
    $region11: #{tpu_custom_call.1} parent=1 // pred_check_branch
      %19 = sbr.rel (0) target = $region13
    $region12: #{tpu_custom_call.1} parent=1 // pred_region
      _
    $region13: #{tpu_custom_call.1} parent=1 // pred_fallthru
      _
    // Predicated region
    $region14: #{tpu_custom_call.1} parent=1 // pred_check
      _
    $region15: #{tpu_custom_call.1} parent=1 // pred_check_branch
      %21 = sbr.rel (0) target = $region17
    $region16: #{tpu_custom_call.1} parent=1 // pred_region
      _
    $region17: #{tpu_custom_call.1} parent=1 // pred_fallthru
      _
    // Predicated region
    $region18: #{tpu_custom_call.1} parent=1 // pred_check
      _
    $region19: #{tpu_custom_call.1} parent=1 // pred_check_branch
      %23 = sbr.rel (0) target = $region21
    $region20: #{tpu_custom_call.1} parent=1 // pred_region
      _
    $region21: #{tpu_custom_call.1} parent=1 // pred_fallthru
      _
    // Predicated region
    $region22: #{tpu_custom_call.1} parent=1 // pred_check
      _
    $region23: #{tpu_custom_call.1} parent=1 // pred_check_branch
      %25 = sbr.rel (0) target = $region25
    $region24: #{tpu_custom_call.1} parent=1 // pred_region
      _
    $region25: #{tpu_custom_call.1} parent=1 // pred_fallthru
      _
    // Predicated region
    $region26: #{tpu_custom_call.1} parent=1 // pred_check
      _
    $region27: #{tpu_custom_call.1} parent=1 // pred_check_branch
      %27 = sbr.rel (0) target = $region29
    $region28: #{tpu_custom_call.1} parent=1 // pred_region
      _
    $region29: #{tpu_custom_call.1} parent=1 // pred_fallthru
      _
    // Predicated region
    $region30: #{tpu_custom_call.1} parent=1 // pred_check
      _
    $region31: #{tpu_custom_call.1} parent=1 // pred_check_branch
      %29 = sbr.rel (0) target = $region33
    $region32: #{tpu_custom_call.1} parent=1 // pred_region
      _
    $region33: #{tpu_custom_call.1} parent=1 // pred_fallthru
      _
    %v30 = vld [vmem:[%s0] sm:$0x7]
    %v31 = vld [vmem:[%s1] sm:$0xff]
    %v32 = vld [vmem:[%s1 + $0x8] sm:$0xff]
    %v33 = vld [vmem:[%s1 + $0x10] sm:$0xff]
    %v34 = vld [vmem:[%s1 + $0x18] sm:$0xff]
    %v35 = vld [vmem:[%s1 + $0x20] sm:$0xff]
    %v36 = vld [vmem:[%s1 + $0x28] sm:$0xff]
    %v37 = vld [vmem:[%s1 + $0x30] sm:$0x3]
    %vm38 = vcmask 23552
    %v40 = vsel %vm38, %v31, 0
    %v43 = vsel %vm38, %v32, 0
    %v46 = vsel %vm38, %v33, 0
    %v49 = vsel %vm38, %v34, 0
    %v52 = vsel %vm38, %v35, 0
    %v55 = vsel %vm38, %v36, 0
    %v58 = vsel %vm38, %v37, 0
    %vm60 = vcmask 1042432
    %v62 = vsel %vm60, %v30, 0
    %64 = vmatprep.subr.mxu0 0.0
    %65 = vmatpush1.msra.mxu0 %v62
    %66 = vmatprep.subr.mxu0 0.0
    %67 = vmatpush1.msra.mxu0 0.0
    %68 = vmatprep.subr.mxu0 0.0
    %69 = vmatpush1.msra.mxu0 0.0
    %70 = vmatprep.subr.mxu0 0.0
    %71 = vmatpush1.msra.mxu0 0.0
    %72 = vmatprep.subr.mxu0 0.0
    %73 = vmatpush1.msra.mxu0 0.0
    %74 = vmatprep.subr.mxu0 0.0
    %75 = vmatpush1.msra.mxu0 0.0
    %76 = vmatprep.subr.mxu0 0.0
    %77 = vmatpush1.msra.mxu0 0.0
    %78 = vmatprep.subr.mxu0 0.0
    %79 = vmatpush1.msra.mxu0 0.0
    %80 = vmatprep.subr.mxu0 0.0
    %81 = vmatpush1.msra.mxu0 0.0
    %82 = vmatprep.subr.mxu0 0.0
    %83 = vmatpush1.msra.mxu0 0.0
    %84 = vmatprep.subr.mxu0 0.0
    %85 = vmatpush1.msra.mxu0 0.0
    %86 = vmatprep.subr.mxu0 0.0
    %87 = vmatpush1.msra.mxu0 0.0
    %88 = vmatprep.subr.mxu0 0.0
    %89 = vmatpush1.msra.mxu0 0.0
    %90 = vmatprep.subr.mxu0 0.0
    %91 = vmatpush1.msra.mxu0 0.0
    %92 = vmatprep.subr.mxu0 0.0
    %93 = vmatpush1.msra.mxu0 0.0
    %94 = vmatprep.subr.mxu0 0.0
    %95 = vmatpush1.msra.mxu0 0.0
    %96 = vmatprep.subr.mxu0 0.0
    %97 = vmatpush1.msra.mxu0 0.0
    %98 = vmatprep.subr.mxu0 0.0
    %99 = vmatpush1.msra.mxu0 0.0
    %100 = vmatprep.subr.mxu0 0.0
    %101 = vmatpush1.msra.mxu0 0.0
    %102 = vmatprep.subr.mxu0 0.0
    %103 = vmatpush1.msra.mxu0 0.0
    %104 = vmatprep.subr.mxu0 0.0
    %105 = vmatpush1.msra.mxu0 0.0
    %106 = vmatprep.subr.mxu0 0.0
    %107 = vmatpush1.msra.mxu0 0.0
    %108 = vmatprep.subr.mxu0 0.0
    %109 = vmatpush1.msra.mxu0 0.0
    %110 = vmatprep.subr.mxu0 0.0
    %111 = vmatpush1.msra.mxu0 0.0
    %112 = vmatprep.subr.mxu0 0.0
    %113 = vmatpush1.msra.mxu0 0.0
    %114 = vmatprep.subr.mxu0 0.0
    %115 = vmatpush1.msra.mxu0 0.0
    %116 = vmatprep.subr.mxu0 0.0
    %117 = vmatpush1.msra.mxu0 0.0
    %118 = vmatprep.subr.mxu0 0.0
    %119 = vmatpush1.msra.mxu0 0.0
    %120 = vmatprep.subr.mxu0 0.0
    %121 = vmatpush1.msra.mxu0 0.0
    %122 = vmatprep.subr.mxu0 0.0
    %123 = vmatpush1.msra.mxu0 0.0
    %124 = vmatprep.subr.mxu0 0.0
    %125 = vmatpush1.msra.mxu0 0.0
    %126 = vmatprep.subr.mxu0 0.0
    %127 = vmatpush1.msra.mxu0 0.0
    %128 = vmatprep.mubr.f32.mxu0 0.0
    %129 = vmatmul.mubr.f32.gmra.mrb[0].mxu0 %v40
    %v130 = vpop.f32.mrb[0].mxu0
    %v131 = vadd.f32 0.0, %v130
    %v132 = vpop.f32.mrb[0].mxu0
    %133 = vmatprep.mubr.f32.mxu0 0.0
    %134 = vmatmul.mubr.f32.gmra.mrb[0].mxu0 %v43
    %v135 = vpop.f32.mrb[0].mxu0
    %v136 = vadd.f32 0.0, %v135
    %v137 = vpop.f32.mrb[0].mxu0
    %138 = vmatprep.mubr.f32.mxu0 0.0
    %139 = vmatmul.mubr.f32.gmra.mrb[0].mxu0 %v46
    %v140 = vpop.f32.mrb[0].mxu0
    %v141 = vadd.f32 0.0, %v140
    %v142 = vpop.f32.mrb[0].mxu0
    %143 = vmatprep.mubr.f32.mxu0 0.0
    %144 = vmatmul.mubr.f32.gmra.mrb[0].mxu0 %v49
    %v145 = vpop.f32.mrb[0].mxu0
    %v146 = vadd.f32 0.0, %v145
    %v147 = vpop.f32.mrb[0].mxu0
    %148 = vmatprep.mubr.f32.mxu0 0.0
    %149 = vmatmul.mubr.f32.gmra.mrb[0].mxu0 %v52
    %v150 = vpop.f32.mrb[0].mxu0
    %v151 = vadd.f32 0.0, %v150
    %v152 = vpop.f32.mrb[0].mxu0
    %153 = vmatprep.mubr.f32.mxu0 0.0
    %154 = vmatmul.mubr.f32.gmra.mrb[0].mxu0 %v55
    %v155 = vpop.f32.mrb[0].mxu0
    %v156 = vadd.f32 0.0, %v155
    %v157 = vpop.f32.mrb[0].mxu0
    %158 = vmatprep.mubr.f32.mxu0 0.0
    %159 = vmatmul.mubr.f32.gmra.mrb[0].mxu0 %v58
    %v160 = vpop.f32.mrb[0].mxu0
    %v161 = vadd.f32 0.0, %v160
    %v162 = vpop.f32.mrb[0].mxu0
    %163 = vdwg.mxu0
    %v164 = vmax.f32 %v131, 0.0
    %v165 = vmax.f32 %v136, 0.0
    %v166 = vmax.f32 %v141, 0.0
    %v167 = vmax.f32 %v146, 0.0
    %v168 = vmax.f32 %v151, 0.0
    %v169 = vmax.f32 %v156, 0.0
    %v170 = vmax.f32 %v161, 0.0
    %v171 = vld [vmem:[%s2] sm:$0xff]
    %v172 = vld [vmem:[%s2 + $0x8] sm:$0xff]
    %v173 = vld [vmem:[%s2 + $0x10] sm:$0xff]
    %v174 = vld [vmem:[%s2 + $0x18] sm:$0xff]
    %v175 = vld [vmem:[%s2 + $0x20] sm:$0xff]
    %v176 = vld [vmem:[%s2 + $0x28] sm:$0xff]
    %v177 = vld [vmem:[%s2 + $0x30] sm:$0x3]
    %v178 = vld [vmem:[%s3] sm:$0xff]
    %v179 = vld [vmem:[%s3 + $0x8] sm:$0xff]
    %v180 = vld [vmem:[%s3 + $0x10] sm:$0xff]
    %v181 = vld [vmem:[%s3 + $0x18] sm:$0xff]
    %v182 = vld [vmem:[%s3 + $0x20] sm:$0xff]
    %v183 = vld [vmem:[%s3 + $0x28] sm:$0xff]
    %v184 = vld [vmem:[%s3 + $0x30] sm:$0x3]
    %186 = vset.pattern.permute.xlu0 0
    %187 = vperm.xlu0 %186, %v178
    %v188 = vpop.permute.xlu0 %187
    %191 = vset.pattern.permute.xlu0 0
    %192 = vperm.xlu0 %191, %v179
    %v193 = vpop.permute.xlu0 %192
    %196 = vset.pattern.permute.xlu0 0
    %197 = vperm.xlu0 %196, %v180
    %v198 = vpop.permute.xlu0 %197
    %201 = vset.pattern.permute.xlu0 0
    %202 = vperm.xlu0 %201, %v181
    %v203 = vpop.permute.xlu0 %202
    %206 = vset.pattern.permute.xlu0 0
    %207 = vperm.xlu0 %206, %v182
    %v208 = vpop.permute.xlu0 %207
    %211 = vset.pattern.permute.xlu0 0
    %212 = vperm.xlu0 %211, %v183
    %v213 = vpop.permute.xlu0 %212
    %216 = vset.pattern.permute.xlu0 0
    %217 = vperm.xlu0 %216, %v184
    %v218 = vpop.permute.xlu0 %217
    %vm220 = vcmask 408576
    %v222 = vsel %vm220, %v171, 0
    %v225 = vsel %vm220, %v172, 0
    %v228 = vsel %vm220, %v173, 0
    %v231 = vsel %vm220, %v174, 0
    %v234 = vsel %vm220, %v175, 0
    %v237 = vsel %vm220, %v176, 0
    %v240 = vsel %vm220, %v177, 0
    %vm242 = vcmask 1041408
    %v244 = vsel %vm242, %v170, 0
    %246 = vmatprep.subr.mxu0 0.0
    %247 = vmatpush1.msra.mxu0 %v164
    %248 = vmatprep.subr.mxu0 0.0
    %249 = vmatpush1.msra.mxu0 %v165
    %250 = vmatprep.subr.mxu0 0.0
    %251 = vmatpush1.msra.mxu0 %v166
    %252 = vmatprep.subr.mxu0 0.0
    %253 = vmatpush1.msra.mxu0 %v167
    %254 = vmatprep.subr.mxu0 0.0
    %255 = vmatpush1.msra.mxu0 %v168
    %256 = vmatprep.subr.mxu0 0.0
    %257 = vmatpush1.msra.mxu0 %v169
    %258 = vmatprep.subr.mxu0 0.0
    %259 = vmatpush1.msra.mxu0 %v244
    %260 = vmatprep.subr.mxu0 0.0
    %261 = vmatpush1.msra.mxu0 0.0
    %262 = vmatprep.subr.mxu0 0.0
    %263 = vmatpush1.msra.mxu0 0.0
    %264 = vmatprep.subr.mxu0 0.0
    %265 = vmatpush1.msra.mxu0 0.0
    %266 = vmatprep.subr.mxu0 0.0
    %267 = vmatpush1.msra.mxu0 0.0
    %268 = vmatprep.subr.mxu0 0.0
    %269 = vmatpush1.msra.mxu0 0.0
    %270 = vmatprep.subr.mxu0 0.0
    %271 = vmatpush1.msra.mxu0 0.0
    %272 = vmatprep.subr.mxu0 0.0
    %273 = vmatpush1.msra.mxu0 0.0
    %274 = vmatprep.subr.mxu0 0.0
    %275 = vmatpush1.msra.mxu0 0.0
    %276 = vmatprep.subr.mxu0 0.0
    %277 = vmatpush1.msra.mxu0 0.0
    %278 = vmatprep.subr.mxu0 0.0
    %279 = vmatpush1.msra.mxu0 0.0
    %280 = vmatprep.subr.mxu0 0.0
    %281 = vmatpush1.msra.mxu0 0.0
    %282 = vmatprep.subr.mxu0 0.0
    %283 = vmatpush1.msra.mxu0 0.0
    %284 = vmatprep.subr.mxu0 0.0
    %285 = vmatpush1.msra.mxu0 0.0
    %286 = vmatprep.subr.mxu0 0.0
    %287 = vmatpush1.msra.mxu0 0.0
    %288 = vmatprep.subr.mxu0 0.0
    %289 = vmatpush1.msra.mxu0 0.0
    %290 = vmatprep.subr.mxu0 0.0
    %291 = vmatpush1.msra.mxu0 0.0
    %292 = vmatprep.subr.mxu0 0.0
    %293 = vmatpush1.msra.mxu0 0.0
    %294 = vmatprep.subr.mxu0 0.0
    %295 = vmatpush1.msra.mxu0 0.0
    %296 = vmatprep.subr.mxu0 0.0
    %297 = vmatpush1.msra.mxu0 0.0
    %298 = vmatprep.subr.mxu0 0.0
    %299 = vmatpush1.msra.mxu0 0.0
    %300 = vmatprep.subr.mxu0 0.0
    %301 = vmatpush1.msra.mxu0 0.0
    %302 = vmatprep.subr.mxu0 0.0
    %303 = vmatpush1.msra.mxu0 0.0
    %304 = vmatprep.subr.mxu0 0.0
    %305 = vmatpush1.msra.mxu0 0.0
    %306 = vmatprep.subr.mxu0 0.0
    %307 = vmatpush1.msra.mxu0 0.0
    %308 = vmatprep.subr.mxu0 0.0
    %309 = vmatpush1.msra.mxu0 0.0
    %310 = vmatprep.mubr.f32.mxu0 0.0
    %311 = vmatmul.mubr.f32.gmra.mrb[0].mxu0 %v222
    %v312 = vpop.f32.mrb[0].mxu0
    %v313 = vadd.f32 %v188, %v312
    %v314 = vpop.f32.mrb[0].mxu0
    %315 = vmatprep.mubr.f32.mxu0 0.0
    %316 = vmatmul.mubr.f32.gmra.mrb[0].mxu0 %v225
    %v317 = vpop.f32.mrb[0].mxu0
    %v318 = vadd.f32 %v193, %v317
    %v319 = vpop.f32.mrb[0].mxu0
    %320 = vmatprep.mubr.f32.mxu0 0.0
    %321 = vmatmul.mubr.f32.gmra.mrb[0].mxu0 %v228
    %v322 = vpop.f32.mrb[0].mxu0
    %v323 = vadd.f32 %v198, %v322
    %v324 = vpop.f32.mrb[0].mxu0
    %325 = vmatprep.mubr.f32.mxu0 0.0
    %326 = vmatmul.mubr.f32.gmra.mrb[0].mxu0 %v231
    %v327 = vpop.f32.mrb[0].mxu0
    %v328 = vadd.f32 %v203, %v327
    %v329 = vpop.f32.mrb[0].mxu0
    %330 = vmatprep.mubr.f32.mxu0 0.0
    %331 = vmatmul.mubr.f32.gmra.mrb[0].mxu0 %v234
    %v332 = vpop.f32.mrb[0].mxu0
    %v333 = vadd.f32 %v208, %v332
    %v334 = vpop.f32.mrb[0].mxu0
    %335 = vmatprep.mubr.f32.mxu0 0.0
    %336 = vmatmul.mubr.f32.gmra.mrb[0].mxu0 %v237
    %v337 = vpop.f32.mrb[0].mxu0
    %v338 = vadd.f32 %v213, %v337
    %v339 = vpop.f32.mrb[0].mxu0
    %340 = vmatprep.mubr.f32.mxu0 0.0
    %341 = vmatmul.mubr.f32.gmra.mrb[0].mxu0 %v240
    %v342 = vpop.f32.mrb[0].mxu0
    %v343 = vadd.f32 %v218, %v342
    %v344 = vpop.f32.mrb[0].mxu0
    %345 = vdwg.mxu0
    %v346 = vmax.f32 %v313, 0.0
    %v347 = vmax.f32 %v318, 0.0
    %v348 = vmax.f32 %v323, 0.0
    %v349 = vmax.f32 %v328, 0.0
    %v350 = vmax.f32 %v333, 0.0
    %v351 = vmax.f32 %v338, 0.0
    %v352 = vmax.f32 %v343, 0.0
    %v353 = vld [vmem:[%s4] sm:$0xff]
    %v354 = vld [vmem:[%s4 + $0x8] sm:$0xff]
    %v355 = vld [vmem:[%s4 + $0x10] sm:$0xff]
    %v356 = vld [vmem:[%s4 + $0x18] sm:$0xff]
    %v357 = vld [vmem:[%s4 + $0x20] sm:$0xff]
    %v358 = vld [vmem:[%s4 + $0x28] sm:$0xff]
    %v359 = vld [vmem:[%s4 + $0x30] sm:$0x3]
    %v360 = vld [vmem:[%s5] sm:$0xff]
    %v361 = vld [vmem:[%s5 + $0x8] sm:$0xff]
    %v362 = vld [vmem:[%s5 + $0x10] sm:$0xff]
    %v363 = vld [vmem:[%s5 + $0x18] sm:$0xff]
    %v364 = vld [vmem:[%s5 + $0x20] sm:$0xff]
    %v365 = vld [vmem:[%s5 + $0x28] sm:$0xff]
    %v366 = vld [vmem:[%s5 + $0x30] sm:$0x3]
    %368 = vset.pattern.permute.xlu0 0
    %369 = vperm.xlu0 %368, %v360
    %v370 = vpop.permute.xlu0 %369
    %373 = vset.pattern.permute.xlu0 0
    %374 = vperm.xlu0 %373, %v361
    %v375 = vpop.permute.xlu0 %374
    %378 = vset.pattern.permute.xlu0 0
    %379 = vperm.xlu0 %378, %v362
    %v380 = vpop.permute.xlu0 %379
    %383 = vset.pattern.permute.xlu0 0
    %384 = vperm.xlu0 %383, %v363
    %v385 = vpop.permute.xlu0 %384
    %388 = vset.pattern.permute.xlu0 0
    %389 = vperm.xlu0 %388, %v364
    %v390 = vpop.permute.xlu0 %389
    %393 = vset.pattern.permute.xlu0 0
    %394 = vperm.xlu0 %393, %v365
    %v395 = vpop.permute.xlu0 %394
    %398 = vset.pattern.permute.xlu0 0
    %399 = vperm.xlu0 %398, %v366
    %v400 = vpop.permute.xlu0 %399
    %v403 = vsel %vm220, %v353, 0
    %v406 = vsel %vm220, %v354, 0
    %v409 = vsel %vm220, %v355, 0
    %v412 = vsel %vm220, %v356, 0
    %v415 = vsel %vm220, %v357, 0
    %v418 = vsel %vm220, %v358, 0
    %v421 = vsel %vm220, %v359, 0
    %v424 = vsel %vm242, %v352, 0
    %426 = vmatprep.subr.mxu0 0.0
    %427 = vmatpush1.msra.mxu0 %v346
    %428 = vmatprep.subr.mxu0 0.0
    %429 = vmatpush1.msra.mxu0 %v347
    %430 = vmatprep.subr.mxu0 0.0
    %431 = vmatpush1.msra.mxu0 %v348
    %432 = vmatprep.subr.mxu0 0.0
    %433 = vmatpush1.msra.mxu0 %v349
    %434 = vmatprep.subr.mxu0 0.0
    %435 = vmatpush1.msra.mxu0 %v350
    %436 = vmatprep.subr.mxu0 0.0
    %437 = vmatpush1.msra.mxu0 %v351
    %438 = vmatprep.subr.mxu0 0.0
    %439 = vmatpush1.msra.mxu0 %v424
    %440 = vmatprep.subr.mxu0 0.0
    %441 = vmatpush1.msra.mxu0 0.0
    %442 = vmatprep.subr.mxu0 0.0
    %443 = vmatpush1.msra.mxu0 0.0
    %444 = vmatprep.subr.mxu0 0.0
    %445 = vmatpush1.msra.mxu0 0.0
    %446 = vmatprep.subr.mxu0 0.0
    %447 = vmatpush1.msra.mxu0 0.0
    %448 = vmatprep.subr.mxu0 0.0
    %449 = vmatpush1.msra.mxu0 0.0
    %450 = vmatprep.subr.mxu0 0.0
    %451 = vmatpush1.msra.mxu0 0.0
    %452 = vmatprep.subr.mxu0 0.0
    %453 = vmatpush1.msra.mxu0 0.0
    %454 = vmatprep.subr.mxu0 0.0
    %455 = vmatpush1.msra.mxu0 0.0
    %456 = vmatprep.subr.mxu0 0.0
    %457 = vmatpush1.msra.mxu0 0.0
    %458 = vmatprep.subr.mxu0 0.0
    %459 = vmatpush1.msra.mxu0 0.0
    %460 = vmatprep.subr.mxu0 0.0
    %461 = vmatpush1.msra.mxu0 0.0
    %462 = vmatprep.subr.mxu0 0.0
    %463 = vmatpush1.msra.mxu0 0.0
    %464 = vmatprep.subr.mxu0 0.0
    %465 = vmatpush1.msra.mxu0 0.0
    %466 = vmatprep.subr.mxu0 0.0
    %467 = vmatpush1.msra.mxu0 0.0
    %468 = vmatprep.subr.mxu0 0.0
    %469 = vmatpush1.msra.mxu0 0.0
    %470 = vmatprep.subr.mxu0 0.0
    %471 = vmatpush1.msra.mxu0 0.0
    %472 = vmatprep.subr.mxu0 0.0
    %473 = vmatpush1.msra.mxu0 0.0
    %474 = vmatprep.subr.mxu0 0.0
    %475 = vmatpush1.msra.mxu0 0.0
    %476 = vmatprep.subr.mxu0 0.0
    %477 = vmatpush1.msra.mxu0 0.0
    %478 = vmatprep.subr.mxu0 0.0
    %479 = vmatpush1.msra.mxu0 0.0
    %480 = vmatprep.subr.mxu0 0.0
    %481 = vmatpush1.msra.mxu0 0.0
    %482 = vmatprep.subr.mxu0 0.0
    %483 = vmatpush1.msra.mxu0 0.0
    %484 = vmatprep.subr.mxu0 0.0
    %485 = vmatpush1.msra.mxu0 0.0
    %486 = vmatprep.subr.mxu0 0.0
    %487 = vmatpush1.msra.mxu0 0.0
    %488 = vmatprep.subr.mxu0 0.0
    %489 = vmatpush1.msra.mxu0 0.0
    %490 = vmatprep.mubr.f32.mxu0 0.0
    %491 = vmatmul.mubr.f32.gmra.mrb[0].mxu0 %v403
    %v492 = vpop.f32.mrb[0].mxu0
    %v493 = vadd.f32 %v370, %v492
    %v494 = vpop.f32.mrb[0].mxu0
    %495 = vmatprep.mubr.f32.mxu0 0.0
    %496 = vmatmul.mubr.f32.gmra.mrb[0].mxu0 %v406
    %v497 = vpop.f32.mrb[0].mxu0
    %v498 = vadd.f32 %v375, %v497
    %v499 = vpop.f32.mrb[0].mxu0
    %500 = vmatprep.mubr.f32.mxu0 0.0
    %501 = vmatmul.mubr.f32.gmra.mrb[0].mxu0 %v409
    %v502 = vpop.f32.mrb[0].mxu0
    %v503 = vadd.f32 %v380, %v502
    %v504 = vpop.f32.mrb[0].mxu0
    %505 = vmatprep.mubr.f32.mxu0 0.0
    %506 = vmatmul.mubr.f32.gmra.mrb[0].mxu0 %v412
    %v507 = vpop.f32.mrb[0].mxu0
    %v508 = vadd.f32 %v385, %v507
    %v509 = vpop.f32.mrb[0].mxu0
    %510 = vmatprep.mubr.f32.mxu0 0.0
    %511 = vmatmul.mubr.f32.gmra.mrb[0].mxu0 %v415
    %v512 = vpop.f32.mrb[0].mxu0
    %v513 = vadd.f32 %v390, %v512
    %v514 = vpop.f32.mrb[0].mxu0
    %515 = vmatprep.mubr.f32.mxu0 0.0
    %516 = vmatmul.mubr.f32.gmra.mrb[0].mxu0 %v418
    %v517 = vpop.f32.mrb[0].mxu0
    %v518 = vadd.f32 %v395, %v517
    %v519 = vpop.f32.mrb[0].mxu0
    %520 = vmatprep.mubr.f32.mxu0 0.0
    %521 = vmatmul.mubr.f32.gmra.mrb[0].mxu0 %v421
    %v522 = vpop.f32.mrb[0].mxu0
    %v523 = vadd.f32 %v400, %v522
    %v524 = vpop.f32.mrb[0].mxu0
    %525 = vdwg.mxu0
    %v526 = vmax.f32 %v493, 0.0
    %v527 = vmax.f32 %v498, 0.0
    %v528 = vmax.f32 %v503, 0.0
    %v529 = vmax.f32 %v508, 0.0
    %v530 = vmax.f32 %v513, 0.0
    %v531 = vmax.f32 %v518, 0.0
    %v532 = vmax.f32 %v523, 0.0
    %v533 = vld [vmem:[%s6] sm:$0x3]
    %v534 = vld [vmem:[%s7] sm:$0x3]
    %536 = vset.pattern.permute.xlu0 0
    %537 = vperm.xlu0 %536, %v534
    %v538 = vpop.permute.xlu0 %537
    %v541 = vsel %vm220, %v533, 0
    %v544 = vsel %vm242, %v532, 0
    %546 = vmatprep.subr.mxu0 0.0
    %547 = vmatpush1.msra.mxu0 %v526
    %548 = vmatprep.subr.mxu0 0.0
    %549 = vmatpush1.msra.mxu0 %v527
    %550 = vmatprep.subr.mxu0 0.0
    %551 = vmatpush1.msra.mxu0 %v528
    %552 = vmatprep.subr.mxu0 0.0
    %553 = vmatpush1.msra.mxu0 %v529
    %554 = vmatprep.subr.mxu0 0.0
    %555 = vmatpush1.msra.mxu0 %v530
    %556 = vmatprep.subr.mxu0 0.0
    %557 = vmatpush1.msra.mxu0 %v531
    %558 = vmatprep.subr.mxu0 0.0
    %559 = vmatpush1.msra.mxu0 %v544
    %560 = vmatprep.subr.mxu0 0.0
    %561 = vmatpush1.msra.mxu0 0.0
    %562 = vmatprep.subr.mxu0 0.0
    %563 = vmatpush1.msra.mxu0 0.0
    %564 = vmatprep.subr.mxu0 0.0
    %565 = vmatpush1.msra.mxu0 0.0
    %566 = vmatprep.subr.mxu0 0.0
    %567 = vmatpush1.msra.mxu0 0.0
    %568 = vmatprep.subr.mxu0 0.0
    %569 = vmatpush1.msra.mxu0 0.0
    %570 = vmatprep.subr.mxu0 0.0
    %571 = vmatpush1.msra.mxu0 0.0
    %572 = vmatprep.subr.mxu0 0.0
    %573 = vmatpush1.msra.mxu0 0.0
    %574 = vmatprep.subr.mxu0 0.0
    %575 = vmatpush1.msra.mxu0 0.0
    %576 = vmatprep.subr.mxu0 0.0
    %577 = vmatpush1.msra.mxu0 0.0
    %578 = vmatprep.subr.mxu0 0.0
    %579 = vmatpush1.msra.mxu0 0.0
    %580 = vmatprep.subr.mxu0 0.0
    %581 = vmatpush1.msra.mxu0 0.0
    %582 = vmatprep.subr.mxu0 0.0
    %583 = vmatpush1.msra.mxu0 0.0
    %584 = vmatprep.subr.mxu0 0.0
    %585 = vmatpush1.msra.mxu0 0.0
    %586 = vmatprep.subr.mxu0 0.0
    %587 = vmatpush1.msra.mxu0 0.0
    %588 = vmatprep.subr.mxu0 0.0
    %589 = vmatpush1.msra.mxu0 0.0
    %590 = vmatprep.subr.mxu0 0.0
    %591 = vmatpush1.msra.mxu0 0.0
    %592 = vmatprep.subr.mxu0 0.0
    %593 = vmatpush1.msra.mxu0 0.0
    %594 = vmatprep.subr.mxu0 0.0
    %595 = vmatpush1.msra.mxu0 0.0
    %596 = vmatprep.subr.mxu0 0.0
    %597 = vmatpush1.msra.mxu0 0.0
    %598 = vmatprep.subr.mxu0 0.0
    %599 = vmatpush1.msra.mxu0 0.0
    %600 = vmatprep.subr.mxu0 0.0
    %601 = vmatpush1.msra.mxu0 0.0
    %602 = vmatprep.subr.mxu0 0.0
    %603 = vmatpush1.msra.mxu0 0.0
    %604 = vmatprep.subr.mxu0 0.0
    %605 = vmatpush1.msra.mxu0 0.0
    %606 = vmatprep.subr.mxu0 0.0
    %607 = vmatpush1.msra.mxu0 0.0
    %608 = vmatprep.subr.mxu0 0.0
    %609 = vmatpush1.msra.mxu0 0.0
    %610 = vmatprep.mubr.f32.mxu0 0.0
    %611 = vmatmul.mubr.f32.gmra.mrb[0].mxu0 %v541
    %v612 = vpop.f32.mrb[0].mxu0
    %v613 = vadd.f32 %v538, %v612
    %v614 = vpop.f32.mrb[0].mxu0
    %615 = vdwg.mxu0
    %616 = vst [vmem:[#allocation2] sm:$0x3] %v613
    // Predicated region
    $region34: #{tpu_custom_call.1} parent=1 // pred_check
      _
    $region35: #{tpu_custom_call.1} parent=1 // pred_check_branch
      %618 = sbr.rel (0) target = $region37
    $region36: #{tpu_custom_call.1} parent=1 // pred_region
      %s620 = ssub.s32 32, 32
      %621 = vsyncadd [#allocation3], %s620
      %s623 = sshll.u32 [#allocation2], 4
      %s624 = int_to_ptr.vmem [resolvable:$true] %s623
      %626 = dma.vmem_to_hbm [thread:$0]  %s624, 32, %s8, [#allocation3]
    $region37: #{tpu_custom_call.1} parent=1 // pred_fallthru
      _
    // Predicated region
    $region38: #{tpu_custom_call.1} parent=1 // pred_check
      _
    $region39: #{tpu_custom_call.1} parent=1 // pred_check_branch
      %628 = sbr.rel (0) target = $region41
    $region40: #{tpu_custom_call.1} parent=1 // pred_region
      %629 = dma.done [#allocation3], 32
    $region41: #{tpu_custom_call.1} parent=1 // pred_fallthru
      _
    %630 = vsyncpa [#allocation3], 1

</llo_original>
